<compile_context>
chip_gen: v5e
topology: v5e:2x2
jax: 0.10.0
libtpu: 0.0.40
codegen_flags: <defaults>
</compile_context>

<pallas_src>
import jax
import jax.numpy as jnp
from jax.experimental import pallas as pl
from jax.experimental.pallas import tpu as pltpu


def _round_up(x, m):
    return ((x + m - 1) // m) * m


def _ffn_kernel(x_ref, w1_ref, b1_ref, w2_ref, b2_ref, o_ref):
    # x_ref : [TM, n_embd]      w1_ref: [n_embd, Hpad]   b1_ref: [1, Hpad]  (f32)
    # w2_ref: [Hpad, n_embd]    b2_ref: [1, n_embd] (f32)    o_ref: [TM, n_embd]
    x = x_ref[...]
    b1 = b1_ref[...]                       # read once; broadcasts hoisted out of dots
    b2 = b2_ref[...]

    h = jnp.dot(x, w1_ref[...], preferred_element_type=jnp.float32) + b1
    h = jnp.maximum(h, 0.0)
    # Dropout: identity (inference mode).
    y = jnp.dot(h.astype(w2_ref.dtype), w2_ref[...],
                preferred_element_type=jnp.float32) + b2
    o_ref[...] = y.astype(o_ref.dtype)


def prepare_params(w1, b1, w2, b2, *, param_dtype=None):
    """One-time, call-invariant weight prep (hoisted out of the hot path).

    Pads the hidden dim to a lane multiple (100 -> 128).  Exact: the padded W1/b1
    columns and the padded W2 rows are zero, so relu(0)=0 contributes nothing.
    """
    n_embd, hidden = w1.shape
    hpad = _round_up(hidden, 128)
    b1 = b1.reshape(1, hidden)
    b2 = b2.reshape(1, n_embd)
    if hpad != hidden:
        w1 = jnp.pad(w1, ((0, 0), (0, hpad - hidden)))
        b1 = jnp.pad(b1, ((0, 0), (0, hpad - hidden)))
        w2 = jnp.pad(w2, ((0, hpad - hidden), (0, 0)))
    if param_dtype is not None:            # e.g. bf16 for mixed-precision callers
        w1 = w1.astype(param_dtype)
        w2 = w2.astype(param_dtype)
    return w1, b1.astype(jnp.float32), w2, b2.astype(jnp.float32)


def _vmem_limit_bytes():
    """Per-generation scoped-VMEM budget (v5e/v6e: 128 MiB phys, v7x: 64 MiB)."""
    try:
        cap = int(pltpu.get_tpu_info().vmem_capacity_bytes)
    except Exception:
        cap = 64 * 1024 * 1024             # conservative fallback (= v7x per-TC VMEM)
    # ~25% headroom for compiler-internal scratch; never ask for more than 100 MiB.
    return int(min(cap * 3 // 4, 100 * 1024 * 1024))


def _choose_tile_m(M, n_embd, hpad, x_itemsize, out_itemsize, vmem_limit, tile_m_max):
    # Per-row VMEM: double-buffered x + out tiles, plus the f32 hidden intermediate.
    bytes_per_row = 2 * (x_itemsize + out_itemsize) * n_embd + 4 * hpad
    fit = max(16, (vmem_limit // 2) // max(bytes_per_row, 1))
    tile_m = min(tile_m_max, fit)
    tile_m = min(tile_m, _round_up(M, 16))            # never bigger than the problem
    if M >= 32:                                       # v7x megacore: >= 2 M-tiles
        tile_m = min(tile_m, _round_up(pl.cdiv(M, 2), 16))
    # Keep ragged-last-block waste under ~10% (no HBM pad copies are ever made; this
    # only bounds the wasted DMA/MXU work on the masked edge block).
    while tile_m > 64:
        spanned = pl.cdiv(M, tile_m) * tile_m
        if (spanned - M) * 10 <= spanned:
            break
        tile_m //= 2
    return max(16, (tile_m // 16) * 16)


def feed_forward(x, params, *, out_dtype=None, tile_m_max=2048):
    """x: [..., n_embd]. params = prepare_params(...). Returns [..., n_embd]."""
    w1, b1, w2, b2 = params
    n_embd = x.shape[-1]
    hpad = w1.shape[1]
    out_dtype = out_dtype or x.dtype

    x2d = x.reshape(-1, n_embd)                       # free row-major reshape
    M = x2d.shape[0]

    vmem_limit = _vmem_limit_bytes()
    tile_m = _choose_tile_m(M, n_embd, hpad,
                            jnp.dtype(x2d.dtype).itemsize,
                            jnp.dtype(out_dtype).itemsize,
                            vmem_limit, tile_m_max)
    grid = (pl.cdiv(M, tile_m),)                      # ragged last block: stores masked

    flops = 4 * M * n_embd * hpad + 2 * M * (hpad + n_embd)
    bytes_accessed = (M * n_embd * (jnp.dtype(x2d.dtype).itemsize
                                    + jnp.dtype(out_dtype).itemsize)
                      + w1.size * jnp.dtype(w1.dtype).itemsize
                      + w2.size * jnp.dtype(w2.dtype).itemsize
                      + (b1.size + b2.size) * 4)

    out2d = pl.pallas_call(
        _ffn_kernel,
        out_shape=jax.ShapeDtypeStruct((M, n_embd), out_dtype),
        grid_spec=pltpu.PrefetchScalarGridSpec(
            num_scalar_prefetch=0,
            grid=grid,
            in_specs=[
                pl.BlockSpec((tile_m, n_embd), lambda i: (i, 0)),   # x tile
                pl.BlockSpec((n_embd, hpad), lambda i: (0, 0)),     # W1 (grid-invariant)
                pl.BlockSpec((1, hpad), lambda i: (0, 0)),          # b1 (grid-invariant)
                pl.BlockSpec((hpad, n_embd), lambda i: (0, 0)),     # W2 (grid-invariant)
                pl.BlockSpec((1, n_embd), lambda i: (0, 0)),        # b2 (grid-invariant)
            ],
            out_specs=pl.BlockSpec((tile_m, n_embd), lambda i: (i, 0)),
        ),
        compiler_params=pltpu.CompilerParams(
            dimension_semantics=("parallel",),        # M axis -> both TCs on v7x
            vmem_limit_bytes=vmem_limit,
        ),
        cost_estimate=pl.CostEstimate(flops=int(flops), transcendentals=0,
                                      bytes_accessed=int(bytes_accessed)),
    )(x2d, w1, b1, w2, b2)

    return out2d.reshape(x.shape[:-1] + (n_embd,))


def init_params(key, n_embd, hidden=100):
    # Mimics PyTorch nn.Linear default init: U(-1/sqrt(fan_in), 1/sqrt(fan_in)).
    k1, k2, k3, k4 = jax.random.split(key, 4)
    bound1 = 1.0 / (n_embd ** 0.5)
    bound2 = 1.0 / (hidden ** 0.5)
    w1 = jax.random.uniform(k1, (n_embd, hidden), jnp.float32, -bound1, bound1)
    b1 = jax.random.uniform(k2, (1, hidden), jnp.float32, -bound1, bound1)
    w2 = jax.random.uniform(k3, (hidden, n_embd), jnp.float32, -bound2, bound2)
    b2 = jax.random.uniform(k4, (1, n_embd), jnp.float32, -bound2, bound2)
    return w1, b1, w2, b2


if __name__ == "__main__":
    key = jax.random.PRNGKey(0)
    n_embd, hidden = 32, 100
    batch, seq = 2, 8

    kx, kp = jax.random.split(key)
    x = jax.random.normal(kx, (batch, seq, n_embd), jnp.float32)
    w1, b1, w2, b2 = init_params(kp, n_embd, hidden)

    params = prepare_params(w1, b1, w2, b2)           # one-time weight prep
    out = feed_forward(x, params)                      # [2, 8, 32], f32
    jax.block_until_ready(out)

    # Reference: eval-mode FeedForward (Dropout = identity).
    ref = jnp.maximum(x @ w1 + b1, 0.0) @ w2 + b2
    assert out.shape == ref.shape, f"shape mismatch {out.shape} vs {ref.shape}"
    assert jnp.allclose(out, ref, atol=2e-2, rtol=2e-2), "mismatch vs reference"

    print("KERNEL_OK")
</pallas_src>

<mosaic_0001>
module attributes {stable_mosaic.version = 11 : i64} {
  func.func @_ffn_kernel(%arg0: i32, %arg1: memref<16x32xf32, #tpu.memory_space<vmem>>, %arg2: memref<32x128xf32, #tpu.memory_space<vmem>>, %arg3: memref<1x128xf32, #tpu.memory_space<vmem>>, %arg4: memref<128x32xf32, #tpu.memory_space<vmem>>, %arg5: memref<1x32xf32, #tpu.memory_space<vmem>>, %arg6: memref<16x32xf32, #tpu.memory_space<vmem>>) attributes {dimension_semantics = [#tpu.dimension_semantics<parallel>], iteration_bounds = array<i64: 1>, scalar_prefetch = 0 : i64, scratch_operands = 0 : i64, tpu.core_type = #tpu.core_type<tc>, window_params = [{transform_indices = @transform_0, window_bounds = array<i64: 16, 32>}, {pipeline_mode = #tpu.pipeline_mode<synchronous>, transform_indices = @transform_1, window_bounds = array<i64: 32, 128>}, {pipeline_mode = #tpu.pipeline_mode<synchronous>, transform_indices = @transform_2, window_bounds = array<i64: 1, 128>}, {pipeline_mode = #tpu.pipeline_mode<synchronous>, transform_indices = @transform_3, window_bounds = array<i64: 128, 32>}, {pipeline_mode = #tpu.pipeline_mode<synchronous>, transform_indices = @transform_4, window_bounds = array<i64: 1, 32>}, {transform_indices = @transform_5, window_bounds = array<i64: 16, 32>}]} {
    %c0 = arith.constant 0 : index
    %c0_0 = arith.constant 0 : index
    %0 = vector.load %arg1[%c0, %c0_0] : memref<16x32xf32, #tpu.memory_space<vmem>>, vector<16x32xf32>
    %c0_1 = arith.constant 0 : index
    %c0_2 = arith.constant 0 : index
    %1 = vector.load %arg3[%c0_1, %c0_2] : memref<1x128xf32, #tpu.memory_space<vmem>>, vector<1x128xf32>
    %c0_3 = arith.constant 0 : index
    %c0_4 = arith.constant 0 : index
    %2 = vector.load %arg5[%c0_3, %c0_4] : memref<1x32xf32, #tpu.memory_space<vmem>>, vector<1x32xf32>
    %c0_5 = arith.constant 0 : index
    %c0_6 = arith.constant 0 : index
    %3 = vector.load %arg2[%c0_5, %c0_6] : memref<32x128xf32, #tpu.memory_space<vmem>>, vector<32x128xf32>
    %cst = arith.constant dense<0.000000e+00> : vector<16x128xf32>
    %4 = tpu.matmul %0, %3, %cst {dimension_numbers = #tpu.dot_dimension_numbers<[1], [0], [0], [1], [0, 0, 1, 1], [], []>} : vector<16x32xf32>, vector<32x128xf32>, vector<16x128xf32> -> vector<16x128xf32>
    %5 = vector.broadcast %1 : vector<1x128xf32> to vector<16x128xf32>
    %6 = arith.addf %4, %5 : vector<16x128xf32>
    %cst_7 = arith.constant 0.000000e+00 : f32
    %7 = vector.broadcast %cst_7 : f32 to vector<16x128xf32>
    %8 = arith.maximumf %6, %7 : vector<16x128xf32>
    %c0_8 = arith.constant 0 : index
    %c0_9 = arith.constant 0 : index
    %9 = vector.load %arg4[%c0_8, %c0_9] : memref<128x32xf32, #tpu.memory_space<vmem>>, vector<128x32xf32>
    %cst_10 = arith.constant dense<0.000000e+00> : vector<16x32xf32>
    %10 = tpu.matmul %8, %9, %cst_10 {dimension_numbers = #tpu.dot_dimension_numbers<[1], [0], [0], [1], [0, 0, 1, 1], [], []>} : vector<16x128xf32>, vector<128x32xf32>, vector<16x32xf32> -> vector<16x32xf32>
    %11 = vector.broadcast %2 : vector<1x32xf32> to vector<16x32xf32>
    %12 = arith.addf %10, %11 : vector<16x32xf32>
    %c0_11 = arith.constant 0 : index
    %c0_12 = arith.constant 0 : index
    %13 = vector.load %arg6[%c0_11, %c0_12] : memref<16x32xf32, #tpu.memory_space<vmem>>, vector<16x32xf32>
    tpu.vector_store %arg6[%c0_11, %c0_12], %12 {strides = array<i32>} : memref<16x32xf32, #tpu.memory_space<vmem>>, vector<16x32xf32>,
    return
  }
  func.func @transform_0(%arg0: i32) -> (i32, i32) {
    %c0_i32 = arith.constant 0 : i32
    %c0_i32_0 = arith.constant 0 : i32
    return %arg0, %c0_i32 : i32, i32
  }
  func.func @transform_1(%arg0: i32) -> (i32, i32) {
    %c0_i32 = arith.constant 0 : i32
    %c0_i32_0 = arith.constant 0 : i32
    %c0_i32_1 = arith.constant 0 : i32
    return %c0_i32, %c0_i32_0 : i32, i32
  }
  func.func @transform_2(%arg0: i32) -> (i32, i32) {
    %c0_i32 = arith.constant 0 : i32
    %c0_i32_0 = arith.constant 0 : i32
    %c0_i32_1 = arith.constant 0 : i32
    return %c0_i32, %c0_i32_0 : i32, i32
  }
  func.func @transform_3(%arg0: i32) -> (i32, i32) {
    %c0_i32 = arith.constant 0 : i32
    %c0_i32_0 = arith.constant 0 : i32
    %c0_i32_1 = arith.constant 0 : i32
    return %c0_i32, %c0_i32_0 : i32, i32
  }
  func.func @transform_4(%arg0: i32) -> (i32, i32) {
    %c0_i32 = arith.constant 0 : i32
    %c0_i32_0 = arith.constant 0 : i32
    %c0_i32_1 = arith.constant 0 : i32
    return %c0_i32, %c0_i32_0 : i32, i32
  }
  func.func @transform_5(%arg0: i32) -> (i32, i32) {
    %c0_i32 = arith.constant 0 : i32
    %c0_i32_0 = arith.constant 0 : i32
    return %arg0, %c0_i32 : i32, i32
  }
}

</mosaic_0001>

<llo_original>
// kernel: tpu_custom_call.1
$region0: #{tpu_custom_call.1}
  #allocation0 [shape = 'u32[]', space=smem, size = 0x4, offset = 0x4, fixed_abs, tag = 'smem constant byte address 0x4 - core index']
  #allocation1 [shape = 'u32[72,128]{1,0:T(1,128)}', space=vmem, size = 0x9000, scoped, tag = 'internal scratch']
  %s0 = inlined_call_operand.vmem [shape: f32[16,32], index: 0, kind: input, shape index: {}]
  %s1 = inlined_call_operand.vmem [shape: f32[32,128], index: 1, kind: input, shape index: {}]
  %s2 = inlined_call_operand.vmem [shape: f32[1,128], index: 2, kind: input, shape index: {}]
  %s3 = inlined_call_operand.vmem [shape: f32[128,32], index: 3, kind: input, shape index: {}]
  %s4 = inlined_call_operand.vmem [shape: f32[1,32], index: 4, kind: input, shape index: {}]
  %s5 = inlined_call_operand.hbm [shape: f32[16,32], index: 5, kind: output, shape index: {}]
  %s6 = sld [smem:[#allocation0]]
  $region30: #{tpu_custom_call.1} parent=0
    _
  %s8 = ssub.s32 1, %s6
  %s9 = scalar_select 0, %s8, %s6
  $region1: #{tpu_custom_call.1} parent=0
    #allocation2 [shape = 'u8[8192]{0}', space=vmem, size = 0x2000, scoped, tag = 'output window, operand 0, single buffered']
    #allocation3 [shape = 's32[1]{0}', space=sflag, size = 0x4, scoped, tag = 'scoped memory for tpu_custom_call.1']
    %10 = vsyncpa [#allocation3], 0
    // Predicated region
    $region2: #{tpu_custom_call.1} parent=1 // pred_check
      _
    $region3: #{tpu_custom_call.1} parent=1 // pred_check_branch
      %12 = sbr.rel (0) target = $region5
    $region4: #{tpu_custom_call.1} parent=1 // pred_region
      _
    $region5: #{tpu_custom_call.1} parent=1 // pred_fallthru
      _
    // Predicated region
    $region6: #{tpu_custom_call.1} parent=1 // pred_check
      _
    $region7: #{tpu_custom_call.1} parent=1 // pred_check_branch
      %14 = sbr.rel (0) target = $region9
    $region8: #{tpu_custom_call.1} parent=1 // pred_region
      _
    $region9: #{tpu_custom_call.1} parent=1 // pred_fallthru
      _
    // Predicated region
    $region10: #{tpu_custom_call.1} parent=1 // pred_check
      _
    $region11: #{tpu_custom_call.1} parent=1 // pred_check_branch
      %16 = sbr.rel (0) target = $region13
    $region12: #{tpu_custom_call.1} parent=1 // pred_region
      _
    $region13: #{tpu_custom_call.1} parent=1 // pred_fallthru
      _
    // Predicated region
    $region14: #{tpu_custom_call.1} parent=1 // pred_check
      _
    $region15: #{tpu_custom_call.1} parent=1 // pred_check_branch
      %18 = sbr.rel (0) target = $region17
    $region16: #{tpu_custom_call.1} parent=1 // pred_region
      _
    $region17: #{tpu_custom_call.1} parent=1 // pred_fallthru
      _
    // Predicated region
    $region18: #{tpu_custom_call.1} parent=1 // pred_check
      _
    $region19: #{tpu_custom_call.1} parent=1 // pred_check_branch
      %20 = sbr.rel (0) target = $region21
    $region20: #{tpu_custom_call.1} parent=1 // pred_region
      _
    $region21: #{tpu_custom_call.1} parent=1 // pred_fallthru
      _
    %v21 = vld [vmem:[%s0] sm:$0xff]
    %v22 = vld [vmem:[%s0 + $0x8] sm:$0xff]
    %v23 = vld [vmem:[%s2] sm:$0x1]
    %v24 = vld [vmem:[%s4] sm:$0x1]
    %v25 = vld [vmem:[%s1] sm:$0xff]
    %v26 = vld [vmem:[%s1 + $0x8] sm:$0xff]
    %v27 = vld [vmem:[%s1 + $0x10] sm:$0xff]
    %v28 = vld [vmem:[%s1 + $0x18] sm:$0xff]
    %v30 = vperm.slane %v23, 0
    %vm32 = vcmask 261120
    %v34 = vsel %vm32, %v21, 0
    %v37 = vsel %vm32, %v22, 0
    %39 = vmatpush.msra.mxu0 0.0
    %40 = vmatpush.msra.mxu0 0.0
    %41 = vmatpush.msra.mxu0 0.0
    %42 = vmatpush.msra.mxu0 0.0
    %43 = vmatpush.msra.mxu0 0.0
    %44 = vmatpush.msra.mxu0 0.0
    %45 = vmatpush.msra.mxu0 0.0
    %46 = vmatpush.msra.mxu0 0.0
    %47 = vmatpush.msra.mxu0 0.0
    %48 = vmatpush.msra.mxu0 0.0
    %49 = vmatpush.msra.mxu0 0.0
    %50 = vmatpush.msra.mxu0 0.0
    %51 = vmatpush.msra.mxu0 %v28
    %52 = vmatpush.msra.mxu0 %v27
    %53 = vmatpush.msra.mxu0 %v26
    %54 = vmatpush.msra.mxu0 %v25
    %55 = vmatmul.f32.gmra.mxu0 %v34
    %v56 = vpop.f32.mrf.mxu0
    %v57 = vadd.f32 %v30, %v56
    %58 = vmatmul.f32.gmra.mxu0 %v37
    %v59 = vpop.f32.mrf.mxu0
    %v60 = vadd.f32 %v30, %v59
    %61 = vdwg.mxu0
    %v62 = vmax.f32 %v57, 0.0
    %v63 = vmax.f32 %v60, 0.0
    %v64 = vld [vmem:[%s3] sm:$0xff]
    %v65 = vld [vmem:[%s3 + $0x8] sm:$0xff]
    %v66 = vld [vmem:[%s3 + $0x10] sm:$0xff]
    %v67 = vld [vmem:[%s3 + $0x18] sm:$0xff]
    %v68 = vld [vmem:[%s3 + $0x20] sm:$0xff]
    %v69 = vld [vmem:[%s3 + $0x28] sm:$0xff]
    %v70 = vld [vmem:[%s3 + $0x30] sm:$0xff]
    %v71 = vld [vmem:[%s3 + $0x38] sm:$0xff]
    %v72 = vld [vmem:[%s3 + $0x40] sm:$0xff]
    %v73 = vld [vmem:[%s3 + $0x48] sm:$0xff]
    %v74 = vld [vmem:[%s3 + $0x50] sm:$0xff]
    %v75 = vld [vmem:[%s3 + $0x58] sm:$0xff]
    %v76 = vld [vmem:[%s3 + $0x60] sm:$0xff]
    %v77 = vld [vmem:[%s3 + $0x68] sm:$0xff]
    %v78 = vld [vmem:[%s3 + $0x70] sm:$0xff]
    %v79 = vld [vmem:[%s3 + $0x78] sm:$0xff]
    %v81 = vperm.slane %v24, 0
    %83 = vmatpush.msra.mxu0 %v79
    %84 = vmatpush.msra.mxu0 %v78
    %85 = vmatpush.msra.mxu0 %v77
    %86 = vmatpush.msra.mxu0 %v76
    %87 = vmatpush.msra.mxu0 %v75
    %88 = vmatpush.msra.mxu0 %v74
    %89 = vmatpush.msra.mxu0 %v73
    %90 = vmatpush.msra.mxu0 %v72
    %91 = vmatpush.msra.mxu0 %v71
    %92 = vmatpush.msra.mxu0 %v70
    %93 = vmatpush.msra.mxu0 %v69
    %94 = vmatpush.msra.mxu0 %v68
    %95 = vmatpush.msra.mxu0 %v67
    %96 = vmatpush.msra.mxu0 %v66
    %97 = vmatpush.msra.mxu0 %v65
    %98 = vmatpush.msra.mxu0 %v64
    %99 = vmatmul.f32.gmra.mxu0 %v62
    %v100 = vpop.f32.mrf.mxu0
    %v101 = vadd.f32 %v81, %v100
    %102 = vmatmul.f32.gmra.mxu0 %v63
    %v103 = vpop.f32.mrf.mxu0
    %v104 = vadd.f32 %v81, %v103
    %105 = vdwg.mxu0
    %106 = vst.msk [vmem:[#allocation2] sm:$0xff] %vm32, %v101
    %107 = vst.msk [vmem:[#allocation2 + $0x8] sm:$0xff] %vm32, %v104
    // Predicated region
    $region22: #{tpu_custom_call.1} parent=1 // pred_check
      _
    $region23: #{tpu_custom_call.1} parent=1 // pred_check_branch
      %109 = sbr.rel (0) target = $region25
    $region24: #{tpu_custom_call.1} parent=1 // pred_region
      %111 = vsyncadd [#allocation3], 0
      %s112 = sshll.u32 [#allocation2], 4
      %s113 = int_to_ptr.vmem [resolvable:$true] %s112
      %s114 = sshll.u32 %s5, 4
      %s115 = int_to_ptr.hbm [resolvable:$true] %s114
      %120 = dma.vmem_to_hbm [thread:$0]  %s113, 256, %s115, [#allocation3], 128, 128, 8
    $region25: #{tpu_custom_call.1} parent=1 // pred_fallthru
      _
    // Predicated region
    $region26: #{tpu_custom_call.1} parent=1 // pred_check
      _
    $region27: #{tpu_custom_call.1} parent=1 // pred_check_branch
      %122 = sbr.rel (0) target = $region29
    $region28: #{tpu_custom_call.1} parent=1 // pred_region
      %124 = dma.done [#allocation3], 256
    $region29: #{tpu_custom_call.1} parent=1 // pred_fallthru
      _
    %125 = vsyncpa [#allocation3], 1

</llo_original>
